<compile_context>
chip_gen: v7x
topology: tpu7x:2x2x1
jax: 0.10.0
libtpu: 0.0.40
codegen_flags: <defaults>
</compile_context>

<pallas_src>
import jax
import jax.numpy as jnp
from jax import lax
from jax.experimental import pallas as pl
from jax.experimental.pallas import tpu as pltpu


def _round_up(x, m):
    return ((x + m - 1) // m) * m


# ----------------------------------------------------------------------------
# Pass 1: tiled matmul (im2col patches @ weight) + per-row-tile partial stats.
#   grid = (m_tiles, k_tiles); axis 0 = parallel rows, axis 1 = K reduction.
#     p_ref:     (TILE_M, TILE_K)   patches tile (compute dtype -> MXU)
#     w_ref:     (K_PAD, COUT_P)    resident weight (constant index_map), or
#                (TILE_K, COUT_P)   streamed weight tile (fallback)
#     y_ref:     (TILE_M, COUT_P)   conv output tile (conv dtype)
#     stats_ref: (1, 2, COUT_P)     [sum; sum_sq] over this row tile (f32)
#     acc_ref:   VMEM (TILE_M, COUT_P) f32 accumulator scratch
# ----------------------------------------------------------------------------
def _make_conv_stats_kernel(tile_k, resident_weight):
    def kernel(p_ref, w_ref, y_ref, stats_ref, acc_ref):
        k = pl.program_id(1)

        @pl.when(k == 0)
        def _():
            acc_ref[...] = jnp.zeros_like(acc_ref)

        if resident_weight:
            start = pl.multiple_of(k * tile_k, tile_k)
            w = w_ref[pl.ds(start, tile_k), :]
        else:
            w = w_ref[...]
        acc_ref[...] += jnp.dot(p_ref[...], w,
                                preferred_element_type=jnp.float32)

        @pl.when(k == pl.num_programs(1) - 1)
        def _():
            y = acc_ref[...]
            y_ref[...] = y.astype(y_ref.dtype)
            s = jnp.sum(y, axis=0, keepdims=True)          # (1, COUT_P)
            ss = jnp.sum(y * y, axis=0, keepdims=True)     # (1, COUT_P)
            stats_ref[...] = jnp.concatenate([s, ss], axis=0)[None]

    return kernel


# ----------------------------------------------------------------------------
# Pass 2: apply BatchNorm affine (precomputed scale/shift) + ReLU, tiled rows.
# ----------------------------------------------------------------------------
def _bn_relu_kernel(y_ref, scale_ref, shift_ref, o_ref):
    y = y_ref[...].astype(jnp.float32)
    o_ref[...] = jnp.maximum(y * scale_ref[...] + shift_ref[...],
                             0.0).astype(o_ref.dtype)


def aspp_module_forward(x_nchw, weight_oihw, gamma, beta, *, rate, eps=1e-5,
                        compute_dtype=jnp.bfloat16, tile_m=512, tile_k=512):
    """Pallas implementation of ASPP_module.forward. Input/output are NCHW."""
    N, Cin, H, W = x_nchw.shape
    Cout, Cin_w, KH, KW = weight_oihw.shape
    assert Cin == Cin_w
    pad = 0 if KH == 1 else rate           # module's padding rule

    out_dtype = x_nchw.dtype
    conv_dtype = compute_dtype             # bf16 intermediate (stats stay f32)
    c_isz = jnp.dtype(compute_dtype).itemsize
    y_isz = jnp.dtype(conv_dtype).itemsize

    M = N * H * W
    K = KH * KW * Cin
    Cout_p = _round_up(Cout, 128)          # lane-dense output / MXU N dim
    tile_k = min(tile_k, _round_up(K, 128))
    # Keep at least 2 row tiles when possible so both v7x TCs get work.
    tile_m = min(tile_m, max(256, _round_up(-(-M // 2), 256)))
    M_pad = _round_up(M, tile_m)
    K_pad = _round_up(K, tile_k)
    m_tiles = M_pad // tile_m
    k_tiles = K_pad // tile_k

    # Keep the whole (K_pad, Cout_p) weight resident in VMEM when it fits.
    resident_w = (K_pad * Cout_p * c_isz) <= (12 << 20)

    # ---------------- glue: layout, spatial pad, im2col (plain JAX) ---------
    # TODO(synk): for very large Cin, accumulate the KH*KW taps inside the
    # kernel (shifted-window reads of padded NHWC x) instead of wrapper-side
    # im2col, which inflates activation HBM reads by KH*KW.
    x_nhwc = jnp.transpose(x_nchw, (0, 2, 3, 1)).astype(compute_dtype)
    x_sp = jnp.pad(x_nhwc, ((0, 0), (pad, pad), (pad, pad), (0, 0)))
    taps = []
    for kh in range(KH):
        for kw in range(KW):
            taps.append(lax.slice(
                x_sp, (0, kh * rate, kw * rate, 0),
                (N, kh * rate + H, kw * rate + W, Cin)))
    patches = jnp.concatenate(taps, axis=-1).reshape(M, K)
    # Zero padding is exact: no bias, so padded rows / K-entries contribute 0
    # to the conv output and to the BN stats (which divide by the true M).
    if (M_pad, K_pad) != (M, K):
        patches = jnp.pad(patches, ((0, M_pad - M), (0, K_pad - K)))

    w2d = jnp.transpose(weight_oihw, (2, 3, 1, 0)).reshape(K, Cout)
    w2d = w2d.astype(compute_dtype)        # explicit MXU input dtype, f32 accum
    if (K_pad, Cout_p) != (K, Cout):
        w2d = jnp.pad(w2d, ((0, K_pad - K), (0, Cout_p - Cout)))

    # ---------------- pass 1: conv matmul + partial BN stats ----------------
    w_block_rows = K_pad if resident_w else tile_k
    vmem_est = (2 * tile_m * tile_k * c_isz           # patches (double buffer)
                + 2 * w_block_rows * Cout_p * c_isz   # weight buffers
                + 2 * tile_m * Cout_p * y_isz         # conv_out tiles
                + 2 * 2 * Cout_p * 4                  # stats tiles
                + tile_m * Cout_p * 4)                # f32 accumulator scratch
    vmem_limit = int(min(max(vmem_est * 3 // 2, 32 << 20), 48 << 20))

    cost = pl.CostEstimate(
        flops=2 * M_pad * K_pad * Cout_p,
        transcendentals=0,
        bytes_accessed=int(M_pad * K_pad * c_isz
                           + K_pad * Cout_p * c_isz * (1 if resident_w else m_tiles)
                           + M_pad * Cout_p * y_isz
                           + m_tiles * 2 * Cout_p * 4))

    if resident_w:
        w_spec = pl.BlockSpec((K_pad, Cout_p), lambda i, k: (0, 0))
    else:
        w_spec = pl.BlockSpec((tile_k, Cout_p), lambda i, k: (k, 0))

    conv_out, part_stats = pl.pallas_call(
        _make_conv_stats_kernel(tile_k, resident_w),
        out_shape=(jax.ShapeDtypeStruct((M_pad, Cout_p), conv_dtype),
                   jax.ShapeDtypeStruct((m_tiles, 2, Cout_p), jnp.float32)),
        grid=(m_tiles, k_tiles),
        in_specs=[
            pl.BlockSpec((tile_m, tile_k), lambda i, k: (i, k)),
            w_spec,
        ],
        out_specs=(
            pl.BlockSpec((tile_m, Cout_p), lambda i, k: (i, 0)),
            pl.BlockSpec((1, 2, Cout_p), lambda i, k: (i, 0, 0)),
        ),
        scratch_shapes=[pltpu.VMEM((tile_m, Cout_p), jnp.float32)],
        compiler_params=pltpu.CompilerParams(
            dimension_semantics=("parallel", "arbitrary"),
            vmem_limit_bytes=vmem_limit),
        cost_estimate=cost,
    )(patches, w2d)

    # ------------- finalize BN batch stats (tiny, plain JAX, f32) -----------
    # Biased (training-mode) batch statistics over the M real rows; padded rows
    # contribute exact zeros to both partial sums.  Running-stat buffers are a
    # training side effect and are not part of the forward output.
    sums = jnp.sum(part_stats[:, 0, :], axis=0)
    sumsqs = jnp.sum(part_stats[:, 1, :], axis=0)
    mean = sums / M
    var = jnp.maximum(sumsqs / M - mean * mean, 0.0)
    gamma_p = jnp.pad(gamma.astype(jnp.float32).reshape(-1), (0, Cout_p - Cout))
    beta_p = jnp.pad(beta.astype(jnp.float32).reshape(-1), (0, Cout_p - Cout))
    scale = (gamma_p * lax.rsqrt(var + eps)).reshape(1, Cout_p)
    shift = (beta_p - mean * scale[0]).reshape(1, Cout_p)

    # ---------------- pass 2: BN affine + ReLU (HBM-bound streaming) --------
    # Larger row tiles than pass 1 (no accumulator); must divide M_pad and we
    # keep >= 2 blocks when possible for megacore.
    max_f = max(1, 2048 // tile_m)
    divs = [d for d in range(1, min(m_tiles, max_f) + 1) if m_tiles % d == 0]
    good = [d for d in divs if m_tiles // d >= 2]
    tile_m2 = tile_m * (max(good) if good else max(divs))

    out2d = pl.pallas_call(
        _bn_relu_kernel,
        out_shape=jax.ShapeDtypeStruct((M_pad, Cout_p), out_dtype),
        grid=(M_pad // tile_m2,),
        in_specs=[
            pl.BlockSpec((tile_m2, Cout_p), lambda i: (i, 0)),
            pl.BlockSpec((1, Cout_p), lambda i: (0, 0)),
            pl.BlockSpec((1, Cout_p), lambda i: (0, 0)),
        ],
        out_specs=pl.BlockSpec((tile_m2, Cout_p), lambda i: (i, 0)),
        compiler_params=pltpu.CompilerParams(
            dimension_semantics=("parallel",)),
    )(conv_out, scale, shift)

    out_nhwc = out2d[:M, :Cout].reshape(N, H, W, Cout)
    # NOTE: the NHWC->NCHW layout change stays in XLA to preserve the module's
    # NCHW contract; a fused consumer could take out_nhwc directly and skip it.
    return jnp.transpose(out_nhwc, (0, 3, 1, 2))


def _reference(x_nchw, weight_oihw, gamma, beta, *, rate, eps=1e-5,
               compute_dtype=jnp.float32):
    """Pure-JAX reference (conv inputs cast to compute_dtype, f32 accum/BN)."""
    KH = weight_oihw.shape[2]
    pad = 0 if KH == 1 else rate
    y = lax.conv_general_dilated(
        x_nchw.astype(compute_dtype), weight_oihw.astype(compute_dtype),
        window_strides=(1, 1), padding=[(pad, pad), (pad, pad)],
        rhs_dilation=(rate, rate),
        dimension_numbers=("NCHW", "OIHW", "NCHW"),
        preferred_element_type=jnp.float32)
    mean = jnp.mean(y, axis=(0, 2, 3), keepdims=True)
    var = jnp.mean((y - mean) ** 2, axis=(0, 2, 3), keepdims=True)
    y = (y - mean) * lax.rsqrt(var + eps)
    y = y * gamma.reshape(1, -1, 1, 1) + beta.reshape(1, -1, 1, 1)
    return jnp.maximum(y, 0.0)


if __name__ == "__main__":
    # ASPP_module(inplanes=4, planes=8, rate=2) on a small deterministic input.
    N, Cin, H, W = 2, 4, 16, 16
    Cout, rate = 8, 2
    KH = KW = 1 if rate == 1 else 3

    key = jax.random.PRNGKey(0)
    kx, kw = jax.random.split(key)
    x = jax.random.normal(kx, (N, Cin, H, W), dtype=jnp.float32)

    # Deterministic kaiming_normal_-style init (fan_in, gain=sqrt(2)).
    fan_in = Cin * KH * KW
    std = (2.0 / fan_in) ** 0.5
    weight = jax.random.normal(kw, (Cout, Cin, KH, KW), dtype=jnp.float32) * std

    # BatchNorm affine params per _init_weight: weight=1, bias=0.
    gamma = jnp.ones((Cout,), dtype=jnp.float32)
    beta = jnp.zeros((Cout,), dtype=jnp.float32)

    out = aspp_module_forward(x, weight, gamma, beta, rate=rate)
    out = jax.block_until_ready(out)
    assert out.shape == (N, Cout, H, W), out.shape

    # Matched-precision reference: bf16 conv inputs, f32 accumulation + BN.
    ref = _reference(x, weight, gamma, beta, rate=rate,
                     compute_dtype=jnp.bfloat16)
    err = float(jnp.max(jnp.abs(out.astype(jnp.float32) - ref)))
    # Tolerance absorbs the bf16 rounding of the stored conv intermediate.
    assert err < 3e-2, err

    print("KERNEL_OK")
</pallas_src>

<mosaic_0001>
module attributes {stable_mosaic.version = 11 : i64} {
  func.func @kernel(%arg0: i32, %arg1: i32, %arg2: memref<256x128xbf16, #tpu.memory_space<vmem>>, %arg3: memref<128x128xbf16, #tpu.memory_space<vmem>>, %arg4: memref<256x128xbf16, #tpu.memory_space<vmem>>, %arg5: memref<1x2x128xf32, #tpu.memory_space<vmem>>, %arg6: memref<256x128xf32, #tpu.memory_space<vmem>>) attributes {dimension_semantics = [#tpu.dimension_semantics<parallel>, #tpu.dimension_semantics<arbitrary>], iteration_bounds = array<i64: 2, 1>, scalar_prefetch = 0 : i64, scratch_operands = 1 : i64, tpu.core_type = #tpu.core_type<tc>, window_params = [{transform_indices = @transform_0, window_bounds = array<i64: 256, 128>}, {pipeline_mode = #tpu.pipeline_mode<synchronous>, transform_indices = @transform_1, window_bounds = array<i64: 128, 128>}, {transform_indices = @transform_2, window_bounds = array<i64: 256, 128>}, {transform_indices = @transform_3, window_bounds = array<i64: 1, 2, 128>}]} {
    %c0_i32 = arith.constant 0 : i32
    %0 = arith.cmpi eq, %arg1, %c0_i32 : i32
    %1 = arith.extui %0 : i1 to i32
    %c0_i32_0 = arith.constant 0 : i32
    %2 = arith.cmpi ne, %1, %c0_i32_0 : i32
    scf.if %2 {
      %cst_9 = arith.constant 0.000000e+00 : f32
      %15 = vector.broadcast %cst_9 : f32 to vector<256x128xf32>
      %c0_10 = arith.constant 0 : index
      %c0_11 = arith.constant 0 : index
      %16 = vector.load %arg6[%c0_10, %c0_11] : memref<256x128xf32, #tpu.memory_space<vmem>>, vector<256x128xf32>
      tpu.vector_store %arg6[%c0_10, %c0_11], %15 {strides = array<i32>} : memref<256x128xf32, #tpu.memory_space<vmem>>, vector<256x128xf32>,
    } else {
    }
    %c128_i32 = arith.constant 128 : i32
    %3 = arith.muli %arg1, %c128_i32 : i32
    %4 = tpu.assume_multiple %3, 128 : i32
    %5 = arith.index_cast %4 : i32 to index
    %c0 = arith.constant 0 : index
    %6 = vector.load %arg3[%5, %c0] : memref<128x128xbf16, #tpu.memory_space<vmem>>, vector<128x128xbf16>
    %c0_1 = arith.constant 0 : index
    %c0_2 = arith.constant 0 : index
    %7 = vector.load %arg6[%c0_1, %c0_2] : memref<256x128xf32, #tpu.memory_space<vmem>>, vector<256x128xf32>
    %c0_3 = arith.constant 0 : index
    %c0_4 = arith.constant 0 : index
    %8 = vector.load %arg2[%c0_3, %c0_4] : memref<256x128xbf16, #tpu.memory_space<vmem>>, vector<256x128xbf16>
    %cst = arith.constant dense<0.000000e+00> : vector<256x128xf32>
    %9 = tpu.matmul %8, %6, %cst {dimension_numbers = #tpu.dot_dimension_numbers<[1], [0], [0], [1], [0, 0, 1, 1], [], []>} : vector<256x128xbf16>, vector<128x128xbf16>, vector<256x128xf32> -> vector<256x128xf32>
    %10 = arith.addf %7, %9 : vector<256x128xf32>
    %c0_5 = arith.constant 0 : index
    %c0_6 = arith.constant 0 : index
    %11 = vector.load %arg6[%c0_5, %c0_6] : memref<256x128xf32, #tpu.memory_space<vmem>>, vector<256x128xf32>
    tpu.vector_store %arg6[%c0_5, %c0_6], %10 {strides = array<i32>} : memref<256x128xf32, #tpu.memory_space<vmem>>, vector<256x128xf32>,
    %c0_i32_7 = arith.constant 0 : i32
    %12 = arith.cmpi eq, %arg1, %c0_i32_7 : i32
    %13 = arith.extui %12 : i1 to i32
    %c0_i32_8 = arith.constant 0 : i32
    %14 = arith.cmpi ne, %13, %c0_i32_8 : i32
    scf.if %14 {
      %c0_9 = arith.constant 0 : index
      %c0_10 = arith.constant 0 : index
      %15 = vector.load %arg6[%c0_9, %c0_10] : memref<256x128xf32, #tpu.memory_space<vmem>>, vector<256x128xf32>
      %16 = arith.truncf %15 : vector<256x128xf32> to vector<256x128xbf16>
      %c0_11 = arith.constant 0 : index
      %c0_12 = arith.constant 0 : index
      %17 = vector.load %arg4[%c0_11, %c0_12] : memref<256x128xbf16, #tpu.memory_space<vmem>>, vector<256x128xbf16>
      tpu.vector_store %arg4[%c0_11, %c0_12], %16 {strides = array<i32>} : memref<256x128xbf16, #tpu.memory_space<vmem>>, vector<256x128xbf16>,
      %cst_13 = arith.constant dense<0.000000e+00> : vector<128xf32>
      %18 = vector.multi_reduction <add>, %15, %cst_13 [0] : vector<256x128xf32> to vector<128xf32>
      %19 = vector.shape_cast %18 : vector<128xf32> to vector<1x128xf32>
      %20 = arith.mulf %15, %15 : vector<256x128xf32>
      %cst_14 = arith.constant dense<0.000000e+00> : vector<128xf32>
      %21 = vector.multi_reduction <add>, %20, %cst_14 [0] : vector<256x128xf32> to vector<128xf32>
      %22 = vector.shape_cast %21 : vector<128xf32> to vector<1x128xf32>
      %23 = tpu.concatenate %19, %22 in 0 : vector<1x128xf32>, vector<1x128xf32> -> vector<2x128xf32>
      %24 = vector.shape_cast %23 : vector<2x128xf32> to vector<1x2x128xf32>
      %c0_15 = arith.constant 0 : index
      %c0_16 = arith.constant 0 : index
      %c0_17 = arith.constant 0 : index
      %25 = vector.load %arg5[%c0_15, %c0_16, %c0_17] : memref<1x2x128xf32, #tpu.memory_space<vmem>>, vector<1x2x128xf32>
      tpu.vector_store %arg5[%c0_15, %c0_16, %c0_17], %24 {strides = array<i32>} : memref<1x2x128xf32, #tpu.memory_space<vmem>>, vector<1x2x128xf32>,
    } else {
    }
    return
  }
  func.func @transform_0(%arg0: i32, %arg1: i32) -> (i32, i32) {
    %c0_i32 = arith.constant 0 : i32
    return %arg0, %arg1 : i32, i32
  }
  func.func @transform_1(%arg0: i32, %arg1: i32) -> (i32, i32) {
    %c0_i32 = arith.constant 0 : i32
    %c0_i32_0 = arith.constant 0 : i32
    %c0_i32_1 = arith.constant 0 : i32
    return %c0_i32, %c0_i32_0 : i32, i32
  }
  func.func @transform_2(%arg0: i32, %arg1: i32) -> (i32, i32) {
    %c0_i32 = arith.constant 0 : i32
    %c0_i32_0 = arith.constant 0 : i32
    return %arg0, %c0_i32 : i32, i32
  }
  func.func @transform_3(%arg0: i32, %arg1: i32) -> (i32, i32, i32) {
    %c0_i32 = arith.constant 0 : i32
    %c0_i32_0 = arith.constant 0 : i32
    %c0_i32_1 = arith.constant 0 : i32
    return %arg0, %c0_i32, %c0_i32_0 : i32, i32, i32
  }
}

</mosaic_0001>

<llo_original>
// kernel: tpu_custom_call.1
$region0: #{tpu_custom_call.1}
  #allocation0 [shape = 'u32[]', space=smem, size = 0x4, offset = 0x4, fixed_abs, tag = 'smem constant byte address 0x4 - core index']
  #allocation1 [shape = 'u32[144,128]{1,0:T(1,128)}', space=vmem, size = 0x12000, scoped, tag = 'internal scratch']
  #allocation2 [shape = 'f32[256,128]{1,0:T(8,128)}', space=vmem, size = 0x20000, scoped, tag = 'scratch operand']
  %s0 = inlined_call_operand.hbm [shape: bf16[512,128], index: 0, kind: input, shape index: {}]
  %s1 = inlined_call_operand.hbm [shape: bf16[128,128], index: 1, kind: input, shape index: {}]
  %s2 = inlined_call_operand.hbm [shape: bf16[512,128], index: 2, kind: output, shape index: {0}]
  %s3 = inlined_call_operand.hbm [shape: f32[2,2,128], index: 3, kind: output, shape index: {1}]
  %4 = xla_tuple %s2, %s3
  %s5 = sld [smem:[#allocation0]]
  $region65: #{tpu_custom_call.1} parent=0
    _
  %s7 = ssub.s32 1, %s5
  %s8 = scalar_select 0, %s7, %s5
  $region1: #{tpu_custom_call.1} parent=0
    #allocation3 [shape = 'u8[131072]{0}', space=vmem, size = 0x20000, scoped, tag = 'input window, operand 0']
    #allocation4 [shape = 's32[2]{0}', space=sflag, size = 0x8, scoped, tag = 'scoped memory for tpu_custom_call.1']
    #allocation5 [shape = 's32[2]{0}', space=sflag, size = 0x8, scoped, tag = 'scoped memory for tpu_custom_call.1']
    #allocation6 [shape = 'u8[32768]{0}', space=vmem, size = 0x8000, scoped, tag = 'input window, operand 1, single buffered']
    #allocation7 [shape = 's32[1]{0}', space=sflag, size = 0x4, scoped, tag = 'scoped memory for tpu_custom_call.1']
    #allocation8 [shape = 'u8[131072]{0}', space=vmem, size = 0x20000, scoped, tag = 'output window, operand 0']
    #allocation9 [shape = 'u8[2048]{0}', space=vmem, size = 0x800, scoped, tag = 'output window, operand 1']
    #allocation10 [shape = 's32[2]{0}', space=sflag, size = 0x8, scoped, tag = 'scoped memory for tpu_custom_call.1']
    %9 = vsyncpa [#allocation4], 0
    %s10 = scalar_lea.sflag [#allocation4], 1
    %11 = vsyncpa %s10, 0
    %12 = vsyncpa [#allocation7], 0
    %13 = vsyncpa [#allocation5], 0
    %s14 = scalar_lea.sflag [#allocation5], 1
    %15 = vsyncpa %s14, 0
    %16 = vsyncpa [#allocation10], 0
    %s17 = scalar_lea.sflag [#allocation10], 1
    %18 = vsyncpa %s17, 0
    loop: start=0, step=1, limit=4
    $region2: #{tpu_custom_call.1} parent=1 // loop_pre_header
      _
    $region3: #{tpu_custom_call.1} parent=1 // loop_header
      %s20 = sphi 0, %s24
      %p21 = scmp.ge.s32.totalorder %s20, 4
      %s27 = sphi 0, %s39
      %s28 = sphi 0, %s35
      %s29 = sphi 0, %s27
      %s30 = sphi 0, %s28
      %s31 = sphi 0, %s29
      %s32 = sphi 0, %s30
      %s44 = sphi 0, %s46
      %s47 = sphi 0, %s44
      %s48 = sphi 0, %s47
      %s64 = sphi 0, %s48
      %s68 = sphi 0, %s68
      %s70 = sphi 0, %s68
      %s71 = sphi 0, %s70
      %s85 = sphi 0, %s71
      %s91 = sphi 0, %s93
      %s94 = sphi 0, %s91
      %s95 = sphi 0, %s94
      %s111 = sphi 0, %s95
      %s117 = sphi 0, %s119
      %s120 = sphi 0, %s117
      %s121 = sphi 0, %s120
      %s137 = sphi 0, %s121
    $region4: #{tpu_custom_call.1} parent=1 // loop_header_branch
      %23 = sbr.rel (%p21) target = $region8
    $region5: #{tpu_custom_call.1} parent=1 // loop_body
      %s25 = ssub.s32 %s20, 1
      %s26 = ssub.s32 %s20, 2
      %s33 = sadd.s32 1, %s28
      %p34 = scmp.ge.s32.totalorder %s33, 1
      %s35 = scalar_select %p34, 0, %s33
      %s36 = sadd.s32 1, %s27
      %s37 = scalar_select %p34, %s36, %s27
      %p38 = scmp.ge.s32.totalorder %s37, 2
      %s39 = scalar_select %p38, 0, %s37
      %s40 = ssub.s32 %s27, %s39
      %s41 = ssub.s32 %s28, %s35
      %s42 = sor.u32 %s40, %s41
      %p43 = scmp.eq.s32.totalorder %s42, 0
      %s45 = sadd.s32 %s44, 1
      %s46 = scalar_select %p43, %s44, %s45
      %p49 = pneg %p43
      %p50 = scmp.eq.s32.totalorder %s20, 1
      %p51 = por %p49, %p50
      %p52 = scmp.ne.s32.totalorder %s44, %s47
      %p53 = scmp.eq.s32.totalorder %s20, 0
      %p54 = por %p52, %p53
      %p55 = scmp.ne.s32.totalorder %s44, %s47
      %p56 = scmp.eq.s32.totalorder %s25, 1
      %p57 = por %p55, %p56
      %p58 = scmp.ne.s32.totalorder %s47, %s48
      %p59 = scmp.eq.s32.totalorder %s25, 0
      %p60 = por %p58, %p59
      %p61 = scmp.ne.s32.totalorder %s47, %s48
      %p62 = scmp.eq.s32.totalorder %s26, 1
      %p63 = por %p61, %p62
      %p65 = scmp.ne.s32.totalorder %s48, %s64
      %p66 = scmp.eq.s32.totalorder %s26, 0
      %p67 = por %p65, %p66
      %s69 = sadd.s32 %s68, 1
      %p72 = scmp.eq.s32.totalorder %s20, 1
      %p73 = scmp.ne.s32.totalorder %s68, %s70
      %p74 = scmp.eq.s32.totalorder %s20, 0
      %p75 = por %p73, %p74
      %p76 = scmp.ne.s32.totalorder %s68, %s70
      %p77 = scmp.eq.s32.totalorder %s25, 1
      %p78 = por %p76, %p77
      %p79 = scmp.ne.s32.totalorder %s70, %s71
      %p80 = scmp.eq.s32.totalorder %s25, 0
      %p81 = por %p79, %p80
      %p82 = scmp.ne.s32.totalorder %s70, %s71
      %p83 = scmp.eq.s32.totalorder %s26, 1
      %p84 = por %p82, %p83
      %p86 = scmp.ne.s32.totalorder %s71, %s85
      %p87 = scmp.eq.s32.totalorder %s26, 0
      %p88 = por %p86, %p87
      %s89 = ssub.s32 %s27, %s39
      %p90 = scmp.eq.s32.totalorder %s89, 0
      %s92 = sadd.s32 %s91, 1
      %s93 = scalar_select %p90, %s91, %s92
      %p96 = pneg %p90
      %p97 = scmp.eq.s32.totalorder %s20, 1
      %p98 = por %p96, %p97
      %p99 = scmp.ne.s32.totalorder %s91, %s94
      %p100 = scmp.eq.s32.totalorder %s20, 0
      %p101 = por %p99, %p100
      %p102 = scmp.ne.s32.totalorder %s91, %s94
      %p103 = scmp.eq.s32.totalorder %s25, 1
      %p104 = por %p102, %p103
      %p105 = scmp.ne.s32.totalorder %s94, %s95
      %p106 = scmp.eq.s32.totalorder %s25, 0
      %p107 = por %p105, %p106
      %p108 = scmp.ne.s32.totalorder %s94, %s95
      %p109 = scmp.eq.s32.totalorder %s26, 1
      %p110 = por %p108, %p109
      %p112 = scmp.ne.s32.totalorder %s95, %s111
      %p113 = scmp.eq.s32.totalorder %s26, 0
      %p114 = por %p112, %p113
      %s115 = ssub.s32 %s27, %s39
      %p116 = scmp.eq.s32.totalorder %s115, 0
      %s118 = sadd.s32 %s117, 1
      %s119 = scalar_select %p116, %s117, %s118
      %p122 = pneg %p116
      %p123 = scmp.eq.s32.totalorder %s20, 1
      %p124 = por %p122, %p123
      %p125 = scmp.ne.s32.totalorder %s117, %s120
      %p126 = scmp.eq.s32.totalorder %s20, 0
      %p127 = por %p125, %p126
      %p128 = scmp.ne.s32.totalorder %s117, %s120
      %p129 = scmp.eq.s32.totalorder %s25, 1
      %p130 = por %p128, %p129
      %p131 = scmp.ne.s32.totalorder %s120, %s121
      %p132 = scmp.eq.s32.totalorder %s25, 0
      %p133 = por %p131, %p132
      %p134 = scmp.ne.s32.totalorder %s120, %s121
      %p135 = scmp.eq.s32.totalorder %s26, 1
      %p136 = por %p134, %p135
      %p138 = scmp.ne.s32.totalorder %s121, %s137
      %p139 = scmp.eq.s32.totalorder %s26, 0
      %p140 = por %p138, %p139
      %p141 = scmp.le.s32.totalorder 1, %s20
      %p142 = scmp.lt.s32.totalorder %s20, 3
      %p143 = pnand %p141, %p142
      %p144 = pneg %p143
      // Predicated region
      $region9: #{tpu_custom_call.1} parent=5 // pred_check
        _
      $region10: #{tpu_custom_call.1} parent=5 // pred_check_branch
        %146 = sbr.rel (%p143) target = $region12
      $region11: #{tpu_custom_call.1} parent=5 // pred_region
        %s147 = ssub.s32 %s20, 1
        // Predicated region
        $region13: #{tpu_custom_call.1} parent=11 // pred_check
          %p148 = pneg %p81
        $region14: #{tpu_custom_call.1} parent=11 // pred_check_branch
          %150 = sbr.rel (%p148) target = $region16
        $region15: #{tpu_custom_call.1} parent=11 // pred_region
          %s152 = ssub.s32 1024, 1024
          %153 = vsyncadd [#allocation7], %s152
          %s154 = sshll.u32 [#allocation6], 4
          %s155 = int_to_ptr.vmem [resolvable:$true] %s154
          %160 = dma.hbm_to_vmem [thread:$0]  %s1, 1024, %s155, [#allocation7], 64, 64, 4
        $region16: #{tpu_custom_call.1} parent=11 // pred_fallthru
          _
      $region12: #{tpu_custom_call.1} parent=5 // pred_fallthru
        _
      %p161 = scmp.lt.s32.totalorder %s20, 2
      // Predicated region
      $region17: #{tpu_custom_call.1} parent=5 // pred_check
        %p162 = pneg %p161
      $region18: #{tpu_custom_call.1} parent=5 // pred_check_branch
        %164 = sbr.rel (%p162) target = $region20
      $region19: #{tpu_custom_call.1} parent=5 // pred_region
        // Predicated region
        $region21: #{tpu_custom_call.1} parent=19 // pred_check
          %p165 = pneg %p54
        $region22: #{tpu_custom_call.1} parent=19 // pred_check_branch
          %167 = sbr.rel (%p165) target = $region24
        $region23: #{tpu_custom_call.1} parent=19 // pred_region
          %s168 = sand.u32 %s44, 1
          %s169 = scalar_lea.sflag [#allocation4], %s168
          %s170 = sand.u32 %s44, 1
          %s171 = smul.addr %s170, 128
          %s172 = scalar_lea.vmem [#allocation3], %s171
          %s173 = smul.u32 32, %s27
          %s175 = ssub.s32 2048, 2048
          %176 = vsyncadd %s169, %s175
          %s177 = sadd.s32 %s28, %s173
          %s178 = smul.addr %s177, 64
          %s179 = scalar_lea.hbm %s0, %s178
          %s180 = sshll.u32 %s172, 4
          %s181 = int_to_ptr.vmem [resolvable:$true] %s180
          %186 = dma.hbm_to_vmem [thread:$0]  %s179, 2048, %s181, %s169, 64, 64, 4
        $region24: #{tpu_custom_call.1} parent=19 // pred_fallthru
          _
      $region20: #{tpu_custom_call.1} parent=5 // pred_fallthru
        _
      %p187 = scmp.le.s32.totalorder 1, %s20
      %p188 = scmp.lt.s32.totalorder %s20, 3
      %p189 = pnand %p187, %p188
      %p190 = pneg %p189
      // Predicated region
      $region25: #{tpu_custom_call.1} parent=5 // pred_check
        _
      $region26: #{tpu_custom_call.1} parent=5 // pred_check_branch
        %192 = sbr.rel (%p189) target = $region28
      $region27: #{tpu_custom_call.1} parent=5 // pred_region
        %s193 = ssub.s32 %s20, 1
        %s194 = sand.u32 %s47, 1
        %s195 = scalar_lea.sflag [#allocation4], %s194
        %s196 = sand.u32 %s47, 1
        %s197 = smul.addr %s196, 128
        %s198 = scalar_lea.vmem [#allocation3], %s197
        // Predicated region
        $region29: #{tpu_custom_call.1} parent=27 // pred_check
          %p199 = pneg %p60
        $region30: #{tpu_custom_call.1} parent=27 // pred_check_branch
          %201 = sbr.rel (%p199) target = $region32
        $region31: #{tpu_custom_call.1} parent=27 // pred_region
          %202 = dma.done %s195, 2048
        $region32: #{tpu_custom_call.1} parent=27 // pred_fallthru
          _
        // Predicated region
        $region33: #{tpu_custom_call.1} parent=27 // pred_check
          %p203 = pneg %p81
        $region34: #{tpu_custom_call.1} parent=27 // pred_check_branch
          %205 = sbr.rel (%p203) target = $region36
        $region35: #{tpu_custom_call.1} parent=27 // pred_region
          %206 = dma.done [#allocation7], 1024
        $region36: #{tpu_custom_call.1} parent=27 // pred_fallthru
          _
        %s207 = sand.u32 %s47, 1
        %s208 = scalar_lea.sflag [#allocation4], %s207
        %s209 = sand.u32 %s47, 1
        %s210 = smul.addr %s209, 128
        %s211 = scalar_lea.vmem [#allocation3], %s210
        %p212 = pneg %p60
        %p213 = pneg %p57
        %p214 = pneg %p81
        %p215 = pneg %p78
        %p216 = pneg %p107
        %p217 = pneg %p104
        %s218 = sand.u32 %s94, 1
        %s219 = scalar_lea.sflag [#allocation5], %s218
        %s220 = sand.u32 %s94, 1
        %s221 = smul.addr %s220, 128
        %s222 = scalar_lea.vmem [#allocation8], %s221
        %p223 = pneg %p133
        %p224 = pneg %p130
        %s225 = sand.u32 %s120, 1
        %s226 = scalar_lea.sflag [#allocation10], %s225
        %s227 = sand.u32 %s120, 1
        %s228 = smul.addr %s227, 2
        %s229 = scalar_lea.vmem [#allocation9], %s228
        %s230 = smul.u32 32, %s29
        %s231 = smul.u32 32, %s29
        %p233 = scmp.eq.s32.totalorder %s30, 0
        // Predicated region
        $region37: #{tpu_custom_call.1} parent=27 // pred_check
          %p234 = pneg %p233
        $region38: #{tpu_custom_call.1} parent=27 // pred_check_branch
          %236 = sbr.rel (%p234) target = $region40
        $region39: #{tpu_custom_call.1} parent=27 // pred_region
          %237 = vst [vmem:[#allocation2] sm:$0xff] 0.0
          %238 = vst [vmem:[#allocation2 + $0x8] sm:$0xff] 0.0
          %239 = vst [vmem:[#allocation2 + $0x10] sm:$0xff] 0.0
          %240 = vst [vmem:[#allocation2 + $0x18] sm:$0xff] 0.0
          %241 = vst [vmem:[#allocation2 + $0x20] sm:$0xff] 0.0
          %242 = vst [vmem:[#allocation2 + $0x28] sm:$0xff] 0.0
          %243 = vst [vmem:[#allocation2 + $0x30] sm:$0xff] 0.0
          %244 = vst [vmem:[#allocation2 + $0x38] sm:$0xff] 0.0
          %245 = vst [vmem:[#allocation2 + $0x40] sm:$0xff] 0.0
          %246 = vst [vmem:[#allocation2 + $0x48] sm:$0xff] 0.0
          %247 = vst [vmem:[#allocation2 + $0x50] sm:$0xff] 0.0
          %248 = vst [vmem:[#allocation2 + $0x58] sm:$0xff] 0.0
          %249 = vst [vmem:[#allocation2 + $0x60] sm:$0xff] 0.0
          %250 = vst [vmem:[#allocation2 + $0x68] sm:$0xff] 0.0
          %251 = vst [vmem:[#allocation2 + $0x70] sm:$0xff] 0.0
          %252 = vst [vmem:[#allocation2 + $0x78] sm:$0xff] 0.0
          %253 = vst [vmem:[#allocation2 + $0x80] sm:$0xff] 0.0
          %254 = vst [vmem:[#allocation2 + $0x88] sm:$0xff] 0.0
          %255 = vst [vmem:[#allocation2 + $0x90] sm:$0xff] 0.0
          %256 = vst [vmem:[#allocation2 + $0x98] sm:$0xff] 0.0
          %257 = vst [vmem:[#allocation2 + $0xa0] sm:$0xff] 0.0
          %258 = vst [vmem:[#allocation2 + $0xa8] sm:$0xff] 0.0
          %259 = vst [vmem:[#allocation2 + $0xb0] sm:$0xff] 0.0
          %260 = vst [vmem:[#allocation2 + $0xb8] sm:$0xff] 0.0
          %261 = vst [vmem:[#allocation2 + $0xc0] sm:$0xff] 0.0
          %262 = vst [vmem:[#allocation2 + $0xc8] sm:$0xff] 0.0
          %263 = vst [vmem:[#allocation2 + $0xd0] sm:$0xff] 0.0
          %264 = vst [vmem:[#allocation2 + $0xd8] sm:$0xff] 0.0
          %265 = vst [vmem:[#allocation2 + $0xe0] sm:$0xff] 0.0
          %266 = vst [vmem:[#allocation2 + $0xe8] sm:$0xff] 0.0
          %267 = vst [vmem:[#allocation2 + $0xf0] sm:$0xff] 0.0
          %268 = vst [vmem:[#allocation2 + $0xf8] sm:$0xff] 0.0
        $region40: #{tpu_custom_call.1} parent=27 // pred_fallthru
          _
        %s269 = smul.u32 %s30, 128
        %s270 = sshra.s32 %s269, 3
        %s271 = sand.u32 %s269, 7
        %s272 = smul.addr %s270, 4
        %s273 = scalar_lea.vmem [#allocation6], %s272
        %v274 = vld [vmem:[%s273] sm:$0xf]
        %v275 = vld [vmem:[%s273 + $0x4] sm:$0xf]
        %v276 = vld [vmem:[%s273 + $0x8] sm:$0xf]
        %v277 = vld [vmem:[%s273 + $0xc] sm:$0xf]
        %v278 = vld [vmem:[%s273 + $0x10] sm:$0xf]
        %v279 = vld [vmem:[%s273 + $0x14] sm:$0xf]
        %v280 = vld [vmem:[%s273 + $0x18] sm:$0xf]
        %v281 = vld [vmem:[%s273 + $0x1c] sm:$0xf]
        %v282 = vld [vmem:[%s273 + $0x20] sm:$0xf]
        %v283 = vld [vmem:[%s273 + $0x24] sm:$0xf]
        %v284 = vld [vmem:[%s273 + $0x28] sm:$0xf]
        %v285 = vld [vmem:[%s273 + $0x2c] sm:$0xf]
        %v286 = vld [vmem:[%s273 + $0x30] sm:$0xf]
        %v287 = vld [vmem:[%s273 + $0x34] sm:$0xf]
        %v288 = vld [vmem:[%s273 + $0x38] sm:$0xf]
        %v289 = vld [vmem:[%s273 + $0x3c] sm:$0xf]
        %v290 = vld [vmem:[#allocation2] sm:$0xff]
        %v291 = vld [vmem:[#allocation2 + $0x8] sm:$0xff]
        %v292 = vld [vmem:[#allocation2 + $0x10] sm:$0xff]
        %v293 = vld [vmem:[#allocation2 + $0x18] sm:$0xff]
        %v294 = vld [vmem:[#allocation2 + $0x20] sm:$0xff]
        %v295 = vld [vmem:[#allocation2 + $0x28] sm:$0xff]
        %v296 = vld [vmem:[#allocation2 + $0x30] sm:$0xff]
        %v297 = vld [vmem:[#allocation2 + $0x38] sm:$0xff]
        %v298 = vld [vmem:[#allocation2 + $0x40] sm:$0xff]
        %v299 = vld [vmem:[#allocation2 + $0x48] sm:$0xff]
        %v300 = vld [vmem:[#allocation2 + $0x50] sm:$0xff]
        %v301 = vld [vmem:[#allocation2 + $0x58] sm:$0xff]
        %v302 = vld [vmem:[#allocation2 + $0x60] sm:$0xff]
        %v303 = vld [vmem:[#allocation2 + $0x68] sm:$0xff]
        %v304 = vld [vmem:[#allocation2 + $0x70] sm:$0xff]
        %v305 = vld [vmem:[#allocation2 + $0x78] sm:$0xff]
        %v306 = vld [vmem:[#allocation2 + $0x80] sm:$0xff]
        %v307 = vld [vmem:[#allocation2 + $0x88] sm:$0xff]
        %v308 = vld [vmem:[#allocation2 + $0x90] sm:$0xff]
        %v309 = vld [vmem:[#allocation2 + $0x98] sm:$0xff]
        %v310 = vld [vmem:[#allocation2 + $0xa0] sm:$0xff]
        %v311 = vld [vmem:[#allocation2 + $0xa8] sm:$0xff]
        %v312 = vld [vmem:[#allocation2 + $0xb0] sm:$0xff]
        %v313 = vld [vmem:[#allocation2 + $0xb8] sm:$0xff]
        %v314 = vld [vmem:[#allocation2 + $0xc0] sm:$0xff]
        %v315 = vld [vmem:[#allocation2 + $0xc8] sm:$0xff]
        %v316 = vld [vmem:[#allocation2 + $0xd0] sm:$0xff]
        %v317 = vld [vmem:[#allocation2 + $0xd8] sm:$0xff]
        %v318 = vld [vmem:[#allocation2 + $0xe0] sm:$0xff]
        %v319 = vld [vmem:[#allocation2 + $0xe8] sm:$0xff]
        %v320 = vld [vmem:[#allocation2 + $0xf0] sm:$0xff]
        %v321 = vld [vmem:[#allocation2 + $0xf8] sm:$0xff]
        %v322 = vld [vmem:[%s198] sm:$0xf]
        %v323 = vld [vmem:[%s198 + $0x4] sm:$0xf]
        %v324 = vld [vmem:[%s198 + $0x8] sm:$0xf]
        %v325 = vld [vmem:[%s198 + $0xc] sm:$0xf]
        %v326 = vld [vmem:[%s198 + $0x10] sm:$0xf]
        %v327 = vld [vmem:[%s198 + $0x14] sm:$0xf]
        %v328 = vld [vmem:[%s198 + $0x18] sm:$0xf]
        %v329 = vld [vmem:[%s198 + $0x1c] sm:$0xf]
        %v330 = vld [vmem:[%s198 + $0x20] sm:$0xf]
        %v331 = vld [vmem:[%s198 + $0x24] sm:$0xf]
        %v332 = vld [vmem:[%s198 + $0x28] sm:$0xf]
        %v333 = vld [vmem:[%s198 + $0x2c] sm:$0xf]
        %v334 = vld [vmem:[%s198 + $0x30] sm:$0xf]
        %v335 = vld [vmem:[%s198 + $0x34] sm:$0xf]
        %v336 = vld [vmem:[%s198 + $0x38] sm:$0xf]
        %v337 = vld [vmem:[%s198 + $0x3c] sm:$0xf]
        %v338 = vld [vmem:[%s198 + $0x40] sm:$0xf]
        %v339 = vld [vmem:[%s198 + $0x44] sm:$0xf]
        %v340 = vld [vmem:[%s198 + $0x48] sm:$0xf]
        %v341 = vld [vmem:[%s198 + $0x4c] sm:$0xf]
        %v342 = vld [vmem:[%s198 + $0x50] sm:$0xf]
        %v343 = vld [vmem:[%s198 + $0x54] sm:$0xf]
        %v344 = vld [vmem:[%s198 + $0x58] sm:$0xf]
        %v345 = vld [vmem:[%s198 + $0x5c] sm:$0xf]
        %v346 = vld [vmem:[%s198 + $0x60] sm:$0xf]
        %v347 = vld [vmem:[%s198 + $0x64] sm:$0xf]
        %v348 = vld [vmem:[%s198 + $0x68] sm:$0xf]
        %v349 = vld [vmem:[%s198 + $0x6c] sm:$0xf]
        %v350 = vld [vmem:[%s198 + $0x70] sm:$0xf]
        %v351 = vld [vmem:[%s198 + $0x74] sm:$0xf]
        %v352 = vld [vmem:[%s198 + $0x78] sm:$0xf]
        %v353 = vld [vmem:[%s198 + $0x7c] sm:$0xf]
        %v386 = vunpack.c.l.b16 %v322
        %v387 = vunpack.c.l.b16 %v323
        %v388 = vunpack.c.l.b16 %v324
        %v389 = vunpack.c.l.b16 %v325
        %v390 = vunpack.c.l.b16 %v326
        %v391 = vunpack.c.l.b16 %v327
        %v392 = vunpack.c.l.b16 %v328
        %v393 = vunpack.c.l.b16 %v329
        %v394 = vunpack.c.l.b16 %v330
        %v395 = vunpack.c.l.b16 %v331
        %v396 = vunpack.c.l.b16 %v332
        %v397 = vunpack.c.l.b16 %v333
        %v398 = vunpack.c.l.b16 %v334
        %v399 = vunpack.c.l.b16 %v335
        %v400 = vunpack.c.l.b16 %v336
        %v401 = vunpack.c.l.b16 %v337
        %v402 = vunpack.c.l.b16 %v338
        %v403 = vunpack.c.l.b16 %v339
        %v404 = vunpack.c.l.b16 %v340
        %v405 = vunpack.c.l.b16 %v341
        %v406 = vunpack.c.l.b16 %v342
        %v407 = vunpack.c.l.b16 %v343
        %v408 = vunpack.c.l.b16 %v344
        %v409 = vunpack.c.l.b16 %v345
        %v410 = vunpack.c.l.b16 %v346
        %v411 = vunpack.c.l.b16 %v347
        %v412 = vunpack.c.l.b16 %v348
        %v413 = vunpack.c.l.b16 %v349
        %v414 = vunpack.c.l.b16 %v350
        %v415 = vunpack.c.l.b16 %v351
        %v416 = vunpack.c.l.b16 %v352
        %v417 = vunpack.c.l.b16 %v353
        %v418 = vpack.c.b16 %v387, %v386
        %v419 = vpack.c.b16 %v389, %v388
        %v420 = vpack.c.b16 %v391, %v390
        %v421 = vpack.c.b16 %v393, %v392
        %v422 = vpack.c.b16 %v395, %v394
        %v423 = vpack.c.b16 %v397, %v396
        %v424 = vpack.c.b16 %v399, %v398
        %v425 = vpack.c.b16 %v401, %v400
        %v426 = vpack.c.b16 %v403, %v402
        %v427 = vpack.c.b16 %v405, %v404
        %v428 = vpack.c.b16 %v407, %v406
        %v429 = vpack.c.b16 %v409, %v408
        %v430 = vpack.c.b16 %v411, %v410
        %v431 = vpack.c.b16 %v413, %v412
        %v432 = vpack.c.b16 %v415, %v414
        %v433 = vpack.c.b16 %v417, %v416
        %v466 = vunpack.c.l.b16 %v274
        %v467 = vunpack.c.l.b16 %v275
        %v468 = vunpack.c.l.b16 %v276
        %v469 = vunpack.c.l.b16 %v277
        %v470 = vunpack.c.l.b16 %v278
        %v471 = vunpack.c.l.b16 %v279
        %v472 = vunpack.c.l.b16 %v280
        %v473 = vunpack.c.l.b16 %v281
        %v474 = vunpack.c.l.b16 %v282
        %v475 = vunpack.c.l.b16 %v283
        %v476 = vunpack.c.l.b16 %v284
        %v477 = vunpack.c.l.b16 %v285
        %v478 = vunpack.c.l.b16 %v286
        %v479 = vunpack.c.l.b16 %v287
        %v480 = vunpack.c.l.b16 %v288
        %v481 = vunpack.c.l.b16 %v289
        %v482 = vpack.c.b16 %v467, %v466
        %v483 = vpack.c.b16 %v469, %v468
        %v484 = vpack.c.b16 %v471, %v470
        %v485 = vpack.c.b16 %v473, %v472
        %v486 = vpack.c.b16 %v475, %v474
        %v487 = vpack.c.b16 %v477, %v476
        %v488 = vpack.c.b16 %v479, %v478
        %v489 = vpack.c.b16 %v481, %v480
        %498 = vmatprep.subr.bf16.mxu0 0
        %499 = vmatpush1.bf16.msra.mxu0 %v482
        %500 = vmatprep.subr.bf16.mxu0 0
        %501 = vmatpush1.bf16.msra.mxu0 %v483
        %502 = vmatprep.subr.bf16.mxu0 0
        %503 = vmatpush1.bf16.msra.mxu0 %v484
        %504 = vmatprep.subr.bf16.mxu0 0
        %505 = vmatpush1.bf16.msra.mxu0 %v485
        %506 = vmatprep.subr.bf16.mxu0 0
        %507 = vmatpush1.bf16.msra.mxu0 %v486
        %508 = vmatprep.subr.bf16.mxu0 0
        %509 = vmatpush1.bf16.msra.mxu0 %v487
        %510 = vmatprep.subr.bf16.mxu0 0
        %511 = vmatpush1.bf16.msra.mxu0 %v488
        %512 = vmatprep.subr.bf16.mxu0 0
        %513 = vmatpush1.bf16.msra.mxu0 %v489
        %514 = vmatprep.subr.bf16.mxu0 0
        %515 = vmatpush1.bf16.msra.mxu0 0
        %516 = vmatprep.subr.bf16.mxu0 0
        %517 = vmatpush1.bf16.msra.mxu0 0
        %518 = vmatprep.subr.bf16.mxu0 0
        %519 = vmatpush1.bf16.msra.mxu0 0
        %520 = vmatprep.subr.bf16.mxu0 0
        %521 = vmatpush1.bf16.msra.mxu0 0
        %522 = vmatprep.subr.bf16.mxu0 0
        %523 = vmatpush1.bf16.msra.mxu0 0
        %524 = vmatprep.subr.bf16.mxu0 0
        %525 = vmatpush1.bf16.msra.mxu0 0
        %526 = vmatprep.subr.bf16.mxu0 0
        %527 = vmatpush1.bf16.msra.mxu0 0
        %528 = vmatprep.subr.bf16.mxu0 0
        %529 = vmatpush1.bf16.msra.mxu0 0
        %530 = vmatprep.mubr.bf16.mxu0 0
        %531 = vmatmul.mubr.bf16.gmra.mrb[0].mxu0 %v418
        %v532 = vpop.f32.mrb[0].mxu0
        %v533 = vadd.f32 0.0, %v532
        %v534 = vpop.f32.mrb[0].mxu0
        %v535 = vpop.f32.mrb[0].mxu0
        %v536 = vadd.f32 0.0, %v535
        %v537 = vpop.f32.mrb[0].mxu0
        %538 = vmatprep.mubr.bf16.mxu0 0
        %539 = vmatmul.mubr.bf16.gmra.mrb[0].mxu0 %v419
        %v540 = vpop.f32.mrb[0].mxu0
        %v541 = vadd.f32 0.0, %v540
        %v542 = vpop.f32.mrb[0].mxu0
        %v543 = vpop.f32.mrb[0].mxu0
        %v544 = vadd.f32 0.0, %v543
        %v545 = vpop.f32.mrb[0].mxu0
        %546 = vmatprep.mubr.bf16.mxu0 0
        %547 = vmatmul.mubr.bf16.gmra.mrb[0].mxu0 %v420
        %v548 = vpop.f32.mrb[0].mxu0
        %v549 = vadd.f32 0.0, %v548
        %v550 = vpop.f32.mrb[0].mxu0
        %v551 = vpop.f32.mrb[0].mxu0
        %v552 = vadd.f32 0.0, %v551
        %v553 = vpop.f32.mrb[0].mxu0
        %554 = vmatprep.mubr.bf16.mxu0 0
        %555 = vmatmul.mubr.bf16.gmra.mrb[0].mxu0 %v421
        %v556 = vpop.f32.mrb[0].mxu0
        %v557 = vadd.f32 0.0, %v556
        %v558 = vpop.f32.mrb[0].mxu0
        %v559 = vpop.f32.mrb[0].mxu0
        %v560 = vadd.f32 0.0, %v559
        %v561 = vpop.f32.mrb[0].mxu0
        %562 = vmatprep.mubr.bf16.mxu0 0
        %563 = vmatmul.mubr.bf16.gmra.mrb[0].mxu0 %v422
        %v564 = vpop.f32.mrb[0].mxu0
        %v565 = vadd.f32 0.0, %v564
        %v566 = vpop.f32.mrb[0].mxu0
        %v567 = vpop.f32.mrb[0].mxu0
        %v568 = vadd.f32 0.0, %v567
        %v569 = vpop.f32.mrb[0].mxu0
        %570 = vmatprep.mubr.bf16.mxu0 0
        %571 = vmatmul.mubr.bf16.gmra.mrb[0].mxu0 %v423
        %v572 = vpop.f32.mrb[0].mxu0
        %v573 = vadd.f32 0.0, %v572
        %v574 = vpop.f32.mrb[0].mxu0
        %v575 = vpop.f32.mrb[0].mxu0
        %v576 = vadd.f32 0.0, %v575
        %v577 = vpop.f32.mrb[0].mxu0
        %578 = vmatprep.mubr.bf16.mxu0 0
        %579 = vmatmul.mubr.bf16.gmra.mrb[0].mxu0 %v424
        %v580 = vpop.f32.mrb[0].mxu0
        %v581 = vadd.f32 0.0, %v580
        %v582 = vpop.f32.mrb[0].mxu0
        %v583 = vpop.f32.mrb[0].mxu0
        %v584 = vadd.f32 0.0, %v583
        %v585 = vpop.f32.mrb[0].mxu0
        %586 = vmatprep.mubr.bf16.mxu0 0
        %587 = vmatmul.mubr.bf16.gmra.mrb[0].mxu0 %v425
        %v588 = vpop.f32.mrb[0].mxu0
        %v589 = vadd.f32 0.0, %v588
        %v590 = vpop.f32.mrb[0].mxu0
        %v591 = vpop.f32.mrb[0].mxu0
        %v592 = vadd.f32 0.0, %v591
        %v593 = vpop.f32.mrb[0].mxu0
        %594 = vmatprep.mubr.bf16.mxu0 0
        %595 = vmatmul.mubr.bf16.gmra.mrb[0].mxu0 %v426
        %v596 = vpop.f32.mrb[0].mxu0
        %v597 = vadd.f32 0.0, %v596
        %v598 = vpop.f32.mrb[0].mxu0
        %v599 = vpop.f32.mrb[0].mxu0
        %v600 = vadd.f32 0.0, %v599
        %v601 = vpop.f32.mrb[0].mxu0
        %602 = vmatprep.mubr.bf16.mxu0 0
        %603 = vmatmul.mubr.bf16.gmra.mrb[0].mxu0 %v427
        %v604 = vpop.f32.mrb[0].mxu0
        %v605 = vadd.f32 0.0, %v604
        %v606 = vpop.f32.mrb[0].mxu0
        %v607 = vpop.f32.mrb[0].mxu0
        %v608 = vadd.f32 0.0, %v607
        %v609 = vpop.f32.mrb[0].mxu0
        %610 = vmatprep.mubr.bf16.mxu0 0
        %611 = vmatmul.mubr.bf16.gmra.mrb[0].mxu0 %v428
        %v612 = vpop.f32.mrb[0].mxu0
        %v613 = vadd.f32 0.0, %v612
        %v614 = vpop.f32.mrb[0].mxu0
        %v615 = vpop.f32.mrb[0].mxu0
        %v616 = vadd.f32 0.0, %v615
        %v617 = vpop.f32.mrb[0].mxu0
        %618 = vmatprep.mubr.bf16.mxu0 0
        %619 = vmatmul.mubr.bf16.gmra.mrb[0].mxu0 %v429
        %v620 = vpop.f32.mrb[0].mxu0
        %v621 = vadd.f32 0.0, %v620
        %v622 = vpop.f32.mrb[0].mxu0
        %v623 = vpop.f32.mrb[0].mxu0
        %v624 = vadd.f32 0.0, %v623
        %v625 = vpop.f32.mrb[0].mxu0
        %626 = vmatprep.mubr.bf16.mxu0 0
        %627 = vmatmul.mubr.bf16.gmra.mrb[0].mxu0 %v430
        %v628 = vpop.f32.mrb[0].mxu0
        %v629 = vadd.f32 0.0, %v628
        %v630 = vpop.f32.mrb[0].mxu0
        %v631 = vpop.f32.mrb[0].mxu0
        %v632 = vadd.f32 0.0, %v631
        %v633 = vpop.f32.mrb[0].mxu0
        %634 = vmatprep.mubr.bf16.mxu0 0
        %635 = vmatmul.mubr.bf16.gmra.mrb[0].mxu0 %v431
        %v636 = vpop.f32.mrb[0].mxu0
        %v637 = vadd.f32 0.0, %v636
        %v638 = vpop.f32.mrb[0].mxu0
        %v639 = vpop.f32.mrb[0].mxu0
        %v640 = vadd.f32 0.0, %v639
        %v641 = vpop.f32.mrb[0].mxu0
        %642 = vmatprep.mubr.bf16.mxu0 0
        %643 = vmatmul.mubr.bf16.gmra.mrb[0].mxu0 %v432
        %v644 = vpop.f32.mrb[0].mxu0
        %v645 = vadd.f32 0.0, %v644
        %v646 = vpop.f32.mrb[0].mxu0
        %v647 = vpop.f32.mrb[0].mxu0
        %v648 = vadd.f32 0.0, %v647
        %v649 = vpop.f32.mrb[0].mxu0
        %650 = vmatprep.mubr.bf16.mxu0 0
        %651 = vmatmul.mubr.bf16.gmra.mrb[0].mxu0 %v433
        %v652 = vpop.f32.mrb[0].mxu0
        %v653 = vadd.f32 0.0, %v652
        %v654 = vpop.f32.mrb[0].mxu0
        %v655 = vpop.f32.mrb[0].mxu0
        %v656 = vadd.f32 0.0, %v655
        %v657 = vpop.f32.mrb[0].mxu0
        %658 = vdwg.mxu0
        %v659 = vadd.f32 %v290, %v533
        %v660 = vadd.f32 %v291, %v536
        %v661 = vadd.f32 %v292, %v541
        %v662 = vadd.f32 %v293, %v544
        %v663 = vadd.f32 %v294, %v549
        %v664 = vadd.f32 %v295, %v552
        %v665 = vadd.f32 %v296, %v557
        %v666 = vadd.f32 %v297, %v560
        %v667 = vadd.f32 %v298, %v565
        %v668 = vadd.f32 %v299, %v568
        %v669 = vadd.f32 %v300, %v573
        %v670 = vadd.f32 %v301, %v576
        %v671 = vadd.f32 %v302, %v581
        %v672 = vadd.f32 %v303, %v584
        %v673 = vadd.f32 %v304, %v589
        %v674 = vadd.f32 %v305, %v592
        %v675 = vadd.f32 %v306, %v597
        %v676 = vadd.f32 %v307, %v600
        %v677 = vadd.f32 %v308, %v605
        %v678 = vadd.f32 %v309, %v608
        %v679 = vadd.f32 %v310, %v613
        %v680 = vadd.f32 %v311, %v616
        %v681 = vadd.f32 %v312, %v621
        %v682 = vadd.f32 %v313, %v624
        %v683 = vadd.f32 %v314, %v629
        %v684 = vadd.f32 %v315, %v632
        %v685 = vadd.f32 %v316, %v637
        %v686 = vadd.f32 %v317, %v640
        %v687 = vadd.f32 %v318, %v645
        %v688 = vadd.f32 %v319, %v648
        %v689 = vadd.f32 %v320, %v653
        %v690 = vadd.f32 %v321, %v656
        %691 = vst [vmem:[#allocation2] sm:$0xff] %v659
        %692 = vst [vmem:[#allocation2 + $0x8] sm:$0xff] %v660
        %693 = vst [vmem:[#allocation2 + $0x10] sm:$0xff] %v661
        %694 = vst [vmem:[#allocation2 + $0x18] sm:$0xff] %v662
        %695 = vst [vmem:[#allocation2 + $0x20] sm:$0xff] %v663
        %696 = vst [vmem:[#allocation2 + $0x28] sm:$0xff] %v664
        %697 = vst [vmem:[#allocation2 + $0x30] sm:$0xff] %v665
        %698 = vst [vmem:[#allocation2 + $0x38] sm:$0xff] %v666
        %699 = vst [vmem:[#allocation2 + $0x40] sm:$0xff] %v667
        %700 = vst [vmem:[#allocation2 + $0x48] sm:$0xff] %v668
        %701 = vst [vmem:[#allocation2 + $0x50] sm:$0xff] %v669
        %702 = vst [vmem:[#allocation2 + $0x58] sm:$0xff] %v670
        %703 = vst [vmem:[#allocation2 + $0x60] sm:$0xff] %v671
        %704 = vst [vmem:[#allocation2 + $0x68] sm:$0xff] %v672
        %705 = vst [vmem:[#allocation2 + $0x70] sm:$0xff] %v673
        %706 = vst [vmem:[#allocation2 + $0x78] sm:$0xff] %v674
        %707 = vst [vmem:[#allocation2 + $0x80] sm:$0xff] %v675
        %708 = vst [vmem:[#allocation2 + $0x88] sm:$0xff] %v676
        %709 = vst [vmem:[#allocation2 + $0x90] sm:$0xff] %v677
        %710 = vst [vmem:[#allocation2 + $0x98] sm:$0xff] %v678
        %711 = vst [vmem:[#allocation2 + $0xa0] sm:$0xff] %v679
        %712 = vst [vmem:[#allocation2 + $0xa8] sm:$0xff] %v680
        %713 = vst [vmem:[#allocation2 + $0xb0] sm:$0xff] %v681
        %714 = vst [vmem:[#allocation2 + $0xb8] sm:$0xff] %v682
        %715 = vst [vmem:[#allocation2 + $0xc0] sm:$0xff] %v683
        %716 = vst [vmem:[#allocation2 + $0xc8] sm:$0xff] %v684
        %717 = vst [vmem:[#allocation2 + $0xd0] sm:$0xff] %v685
        %718 = vst [vmem:[#allocation2 + $0xd8] sm:$0xff] %v686
        %719 = vst [vmem:[#allocation2 + $0xe0] sm:$0xff] %v687
        %720 = vst [vmem:[#allocation2 + $0xe8] sm:$0xff] %v688
        %721 = vst [vmem:[#allocation2 + $0xf0] sm:$0xff] %v689
        %722 = vst [vmem:[#allocation2 + $0xf8] sm:$0xff] %v690
        // Predicated region
        $region41: #{tpu_custom_call.1} parent=27 // pred_check
          %p723 = pneg %p233
        $region42: #{tpu_custom_call.1} parent=27 // pred_check_branch
          %725 = sbr.rel (%p723) target = $region44
        $region43: #{tpu_custom_call.1} parent=27 // pred_region
          %v726 = vld [vmem:[#allocation2] sm:$0xff]
          %v727 = vld [vmem:[#allocation2 + $0x8] sm:$0xff]
          %v728 = vld [vmem:[#allocation2 + $0x10] sm:$0xff]
          %v729 = vld [vmem:[#allocation2 + $0x18] sm:$0xff]
          %v730 = vld [vmem:[#allocation2 + $0x20] sm:$0xff]
          %v731 = vld [vmem:[#allocation2 + $0x28] sm:$0xff]
          %v732 = vld [vmem:[#allocation2 + $0x30] sm:$0xff]
          %v733 = vld [vmem:[#allocation2 + $0x38] sm:$0xff]
          %v734 = vld [vmem:[#allocation2 + $0x40] sm:$0xff]
          %v735 = vld [vmem:[#allocation2 + $0x48] sm:$0xff]
          %v736 = vld [vmem:[#allocation2 + $0x50] sm:$0xff]
          %v737 = vld [vmem:[#allocation2 + $0x58] sm:$0xff]
          %v738 = vld [vmem:[#allocation2 + $0x60] sm:$0xff]
          %v739 = vld [vmem:[#allocation2 + $0x68] sm:$0xff]
          %v740 = vld [vmem:[#allocation2 + $0x70] sm:$0xff]
          %v741 = vld [vmem:[#allocation2 + $0x78] sm:$0xff]
          %v742 = vld [vmem:[#allocation2 + $0x80] sm:$0xff]
          %v743 = vld [vmem:[#allocation2 + $0x88] sm:$0xff]
          %v744 = vld [vmem:[#allocation2 + $0x90] sm:$0xff]
          %v745 = vld [vmem:[#allocation2 + $0x98] sm:$0xff]
          %v746 = vld [vmem:[#allocation2 + $0xa0] sm:$0xff]
          %v747 = vld [vmem:[#allocation2 + $0xa8] sm:$0xff]
          %v748 = vld [vmem:[#allocation2 + $0xb0] sm:$0xff]
          %v749 = vld [vmem:[#allocation2 + $0xb8] sm:$0xff]
          %v750 = vld [vmem:[#allocation2 + $0xc0] sm:$0xff]
          %v751 = vld [vmem:[#allocation2 + $0xc8] sm:$0xff]
          %v752 = vld [vmem:[#allocation2 + $0xd0] sm:$0xff]
          %v753 = vld [vmem:[#allocation2 + $0xd8] sm:$0xff]
          %v754 = vld [vmem:[#allocation2 + $0xe0] sm:$0xff]
          %v755 = vld [vmem:[#allocation2 + $0xe8] sm:$0xff]
          %v756 = vld [vmem:[#allocation2 + $0xf0] sm:$0xff]
          %v757 = vld [vmem:[#allocation2 + $0xf8] sm:$0xff]
          %v758 = vpack.c.bf16 %v727, %v726
          %v759 = vpack.c.bf16 %v729, %v728
          %v760 = vpack.c.bf16 %v731, %v730
          %v761 = vpack.c.bf16 %v733, %v732
          %v762 = vpack.c.bf16 %v735, %v734
          %v763 = vpack.c.bf16 %v737, %v736
          %v764 = vpack.c.bf16 %v739, %v738
          %v765 = vpack.c.bf16 %v741, %v740
          %v766 = vpack.c.bf16 %v743, %v742
          %v767 = vpack.c.bf16 %v745, %v744
          %v768 = vpack.c.bf16 %v747, %v746
          %v769 = vpack.c.bf16 %v749, %v748
          %v770 = vpack.c.bf16 %v751, %v750
          %v771 = vpack.c.bf16 %v753, %v752
          %v772 = vpack.c.bf16 %v755, %v754
          %v773 = vpack.c.bf16 %v757, %v756
          %v790 = vunpack.c.l.b16 %v758
          %v791 = vunpack.c.h.b16 %v758
          %v792 = vunpack.c.l.b16 %v759
          %v793 = vunpack.c.h.b16 %v759
          %v794 = vunpack.c.l.b16 %v760
          %v795 = vunpack.c.h.b16 %v760
          %v796 = vunpack.c.l.b16 %v761
          %v797 = vunpack.c.h.b16 %v761
          %v798 = vunpack.c.l.b16 %v762
          %v799 = vunpack.c.h.b16 %v762
          %v800 = vunpack.c.l.b16 %v763
          %v801 = vunpack.c.h.b16 %v763
          %v802 = vunpack.c.l.b16 %v764
          %v803 = vunpack.c.h.b16 %v764
          %v804 = vunpack.c.l.b16 %v765
          %v805 = vunpack.c.h.b16 %v765
          %v806 = vunpack.c.l.b16 %v766
          %v807 = vunpack.c.h.b16 %v766
          %v808 = vunpack.c.l.b16 %v767
          %v809 = vunpack.c.h.b16 %v767
          %v810 = vunpack.c.l.b16 %v768
          %v811 = vunpack.c.h.b16 %v768
          %v812 = vunpack.c.l.b16 %v769
          %v813 = vunpack.c.h.b16 %v769
          %v814 = vunpack.c.l.b16 %v770
          %v815 = vunpack.c.h.b16 %v770
          %v816 = vunpack.c.l.b16 %v771
          %v817 = vunpack.c.h.b16 %v771
          %v818 = vunpack.c.l.b16 %v772
          %v819 = vunpack.c.h.b16 %v772
          %v820 = vunpack.c.l.b16 %v773
          %v821 = vunpack.c.h.b16 %v773
          %v822 = vpack.c.b16 %v790, %v790
          %v823 = vpack.c.b16 %v791, %v791
          %v824 = vpack.c.b16 %v792, %v792
          %v825 = vpack.c.b16 %v793, %v793
          %v826 = vpack.c.b16 %v794, %v794
          %v827 = vpack.c.b16 %v795, %v795
          %v828 = vpack.c.b16 %v796, %v796
          %v829 = vpack.c.b16 %v797, %v797
          %v830 = vpack.c.b16 %v798, %v798
          %v831 = vpack.c.b16 %v799, %v799
          %v832 = vpack.c.b16 %v800, %v800
          %v833 = vpack.c.b16 %v801, %v801
          %v834 = vpack.c.b16 %v802, %v802
          %v835 = vpack.c.b16 %v803, %v803
          %v836 = vpack.c.b16 %v804, %v804
          %v837 = vpack.c.b16 %v805, %v805
          %v838 = vpack.c.b16 %v806, %v806
          %v839 = vpack.c.b16 %v807, %v807
          %v840 = vpack.c.b16 %v808, %v808
          %v841 = vpack.c.b16 %v809, %v809
          %v842 = vpack.c.b16 %v810, %v810
          %v843 = vpack.c.b16 %v811, %v811
          %v844 = vpack.c.b16 %v812, %v812
          %v845 = vpack.c.b16 %v813, %v813
          %v846 = vpack.c.b16 %v814, %v814
          %v847 = vpack.c.b16 %v815, %v815
          %v848 = vpack.c.b16 %v816, %v816
          %v849 = vpack.c.b16 %v817, %v817
          %v850 = vpack.c.b16 %v818, %v818
          %v851 = vpack.c.b16 %v819, %v819
          %v852 = vpack.c.b16 %v820, %v820
          %v853 = vpack.c.b16 %v821, %v821
          %886 = vst [vmem:[%s222] sm:$0xf] %v822
          %887 = vst [vmem:[%s222 + $0x4] sm:$0xf] %v823
          %888 = vst [vmem:[%s222 + $0x8] sm:$0xf] %v824
          %889 = vst [vmem:[%s222 + $0xc] sm:$0xf] %v825
          %890 = vst [vmem:[%s222 + $0x10] sm:$0xf] %v826
          %891 = vst [vmem:[%s222 + $0x14] sm:$0xf] %v827
          %892 = vst [vmem:[%s222 + $0x18] sm:$0xf] %v828
          %893 = vst [vmem:[%s222 + $0x1c] sm:$0xf] %v829
          %894 = vst [vmem:[%s222 + $0x20] sm:$0xf] %v830
          %895 = vst [vmem:[%s222 + $0x24] sm:$0xf] %v831
          %896 = vst [vmem:[%s222 + $0x28] sm:$0xf] %v832
          %897 = vst [vmem:[%s222 + $0x2c] sm:$0xf] %v833
          %898 = vst [vmem:[%s222 + $0x30] sm:$0xf] %v834
          %899 = vst [vmem:[%s222 + $0x34] sm:$0xf] %v835
          %900 = vst [vmem:[%s222 + $0x38] sm:$0xf] %v836
          %901 = vst [vmem:[%s222 + $0x3c] sm:$0xf] %v837
          %902 = vst [vmem:[%s222 + $0x40] sm:$0xf] %v838
          %903 = vst [vmem:[%s222 + $0x44] sm:$0xf] %v839
          %904 = vst [vmem:[%s222 + $0x48] sm:$0xf] %v840
          %905 = vst [vmem:[%s222 + $0x4c] sm:$0xf] %v841
          %906 = vst [vmem:[%s222 + $0x50] sm:$0xf] %v842
          %907 = vst [vmem:[%s222 + $0x54] sm:$0xf] %v843
          %908 = vst [vmem:[%s222 + $0x58] sm:$0xf] %v844
          %909 = vst [vmem:[%s222 + $0x5c] sm:$0xf] %v845
          %910 = vst [vmem:[%s222 + $0x60] sm:$0xf] %v846
          %911 = vst [vmem:[%s222 + $0x64] sm:$0xf] %v847
          %912 = vst [vmem:[%s222 + $0x68] sm:$0xf] %v848
          %913 = vst [vmem:[%s222 + $0x6c] sm:$0xf] %v849
          %914 = vst [vmem:[%s222 + $0x70] sm:$0xf] %v850
          %915 = vst [vmem:[%s222 + $0x74] sm:$0xf] %v851
          %916 = vst [vmem:[%s222 + $0x78] sm:$0xf] %v852
          %917 = vst [vmem:[%s222 + $0x7c] sm:$0xf] %v853
          %v918 = vadd.f32 %v726, %v727
          %v919 = vadd.f32 %v918, %v728
          %v920 = vadd.f32 %v919, %v729
          %v921 = vadd.f32 %v920, %v730
          %v922 = vadd.f32 %v921, %v731
          %v923 = vadd.f32 %v922, %v732
          %v924 = vadd.f32 %v923, %v733
          %v925 = vadd.f32 %v924, %v734
          %v926 = vadd.f32 %v925, %v735
          %v927 = vadd.f32 %v926, %v736
          %v928 = vadd.f32 %v927, %v737
          %v929 = vadd.f32 %v928, %v738
          %v930 = vadd.f32 %v929, %v739
          %v931 = vadd.f32 %v930, %v740
          %v932 = vadd.f32 %v931, %v741
          %v933 = vadd.f32 %v932, %v742
          %v934 = vadd.f32 %v933, %v743
          %v935 = vadd.f32 %v934, %v744
          %v936 = vadd.f32 %v935, %v745
          %v937 = vadd.f32 %v936, %v746
          %v938 = vadd.f32 %v937, %v747
          %v939 = vadd.f32 %v938, %v748
          %v940 = vadd.f32 %v939, %v749
          %v941 = vadd.f32 %v940, %v750
          %v942 = vadd.f32 %v941, %v751
          %v943 = vadd.f32 %v942, %v752
          %v944 = vadd.f32 %v943, %v753
          %v945 = vadd.f32 %v944, %v754
          %v946 = vadd.f32 %v945, %v755
          %v947 = vadd.f32 %v946, %v756
          %v948 = vadd.f32 %v947, %v757
          %v949 = vrot.slane %v948, 4
          %v950 = vadd.f32 %v948, %v949
          %v951 = vrot.slane %v950, 2
          %v952 = vadd.f32 %v950, %v951
          %v953 = vrot.slane %v952, 1
          %v954 = vadd.f32 %v952, %v953
          %v955 = vmul.f32 %v726, %v726
          %v956 = vmul.f32 %v727, %v727
          %v957 = vmul.f32 %v728, %v728
          %v958 = vmul.f32 %v729, %v729
          %v959 = vmul.f32 %v730, %v730
          %v960 = vmul.f32 %v731, %v731
          %v961 = vmul.f32 %v732, %v732
          %v962 = vmul.f32 %v733, %v733
          %v963 = vmul.f32 %v734, %v734
          %v964 = vmul.f32 %v735, %v735
          %v965 = vmul.f32 %v736, %v736
          %v966 = vmul.f32 %v737, %v737
          %v967 = vmul.f32 %v738, %v738
          %v968 = vmul.f32 %v739, %v739
          %v969 = vmul.f32 %v740, %v740
          %v970 = vmul.f32 %v741, %v741
          %v971 = vmul.f32 %v742, %v742
          %v972 = vmul.f32 %v743, %v743
          %v973 = vmul.f32 %v744, %v744
          %v974 = vmul.f32 %v745, %v745
          %v975 = vmul.f32 %v746, %v746
          %v976 = vmul.f32 %v747, %v747
          %v977 = vmul.f32 %v748, %v748
          %v978 = vmul.f32 %v749, %v749
          %v979 = vmul.f32 %v750, %v750
          %v980 = vmul.f32 %v751, %v751
          %v981 = vmul.f32 %v752, %v752
          %v982 = vmul.f32 %v753, %v753
          %v983 = vmul.f32 %v754, %v754
          %v984 = vmul.f32 %v755, %v755
          %v985 = vmul.f32 %v756, %v756
          %v986 = vmul.f32 %v757, %v757
          %v987 = vadd.f32 %v955, %v956
          %v988 = vadd.f32 %v987, %v957
          %v989 = vadd.f32 %v988, %v958
          %v990 = vadd.f32 %v989, %v959
          %v991 = vadd.f32 %v990, %v960
          %v992 = vadd.f32 %v991, %v961
          %v993 = vadd.f32 %v992, %v962
          %v994 = vadd.f32 %v993, %v963
          %v995 = vadd.f32 %v994, %v964
          %v996 = vadd.f32 %v995, %v965
          %v997 = vadd.f32 %v996, %v966
          %v998 = vadd.f32 %v997, %v967
          %v999 = vadd.f32 %v998, %v968
          %v1000 = vadd.f32 %v999, %v969
          %v1001 = vadd.f32 %v1000, %v970
          %v1002 = vadd.f32 %v1001, %v971
          %v1003 = vadd.f32 %v1002, %v972
          %v1004 = vadd.f32 %v1003, %v973
          %v1005 = vadd.f32 %v1004, %v974
          %v1006 = vadd.f32 %v1005, %v975
          %v1007 = vadd.f32 %v1006, %v976
          %v1008 = vadd.f32 %v1007, %v977
          %v1009 = vadd.f32 %v1008, %v978
          %v1010 = vadd.f32 %v1009, %v979
          %v1011 = vadd.f32 %v1010, %v980
          %v1012 = vadd.f32 %v1011, %v981
          %v1013 = vadd.f32 %v1012, %v982
          %v1014 = vadd.f32 %v1013, %v983
          %v1015 = vadd.f32 %v1014, %v984
          %v1016 = vadd.f32 %v1015, %v985
          %v1017 = vadd.f32 %v1016, %v986
          %v1018 = vrot.slane %v1017, 4
          %v1019 = vadd.f32 %v1017, %v1018
          %v1020 = vrot.slane %v1019, 2
          %v1021 = vadd.f32 %v1019, %v1020
          %v1022 = vrot.slane %v1021, 1
          %v1023 = vadd.f32 %v1021, %v1022
          %vm1024 = vcmask 1040384
          %v1025 = vsel %vm1024, %v954, %v1023
          %1026 = vst [vmem:[%s229] sm:$0x3] %v1025
        $region44: #{tpu_custom_call.1} parent=27 // pred_fallthru
          _
        %s1027 = sand.u32 %s94, 1
        %s1028 = scalar_lea.sflag [#allocation5], %s1027
        %s1029 = sand.u32 %s94, 1
        %s1030 = smul.addr %s1029, 128
        %s1031 = scalar_lea.vmem [#allocation8], %s1030
        %s1032 = sand.u32 %s120, 1
        %s1033 = scalar_lea.sflag [#allocation10], %s1032
        %s1034 = sand.u32 %s120, 1
        %s1035 = smul.addr %s1034, 2
        %s1036 = scalar_lea.vmem [#allocation9], %s1035
        // Predicated region
        $region45: #{tpu_custom_call.1} parent=27 // pred_check
          %p1037 = pneg %p104
        $region46: #{tpu_custom_call.1} parent=27 // pred_check_branch
          %1039 = sbr.rel (%p1037) target = $region48
        $region47: #{tpu_custom_call.1} parent=27 // pred_region
          %s1040 = smul.u32 32, %s29
          %s1042 = ssub.s32 2048, 2048
          %1043 = vsyncadd %s1028, %s1042
          %s1044 = smul.addr %s1040, 64
          %s1045 = scalar_lea.hbm %s2, %s1044
          %s1046 = sshll.u32 %s1031, 4
          %s1047 = int_to_ptr.vmem [resolvable:$true] %s1046
          %1052 = dma.vmem_to_hbm [thread:$0]  %s1047, 2048, %s1045, %s1028, 64, 64, 4
        $region48: #{tpu_custom_call.1} parent=27 // pred_fallthru
          _
        // Predicated region
        $region49: #{tpu_custom_call.1} parent=27 // pred_check
          %p1053 = pneg %p130
        $region50: #{tpu_custom_call.1} parent=27 // pred_check_branch
          %1055 = sbr.rel (%p1053) target = $region52
        $region51: #{tpu_custom_call.1} parent=27 // pred_region
          %s1057 = ssub.s32 32, 32
          %1058 = vsyncadd %s1033, %s1057
          %s1059 = smul.addr %s29, 32
          %s1060 = scalar_lea.hbm %s3, %s1059
          %s1062 = sshll.u32 %s1036, 4
          %s1063 = int_to_ptr.vmem [resolvable:$true] %s1062
          %1065 = dma.vmem_to_hbm [thread:$0]  %s1063, 32, %s1060, %s1033
        $region52: #{tpu_custom_call.1} parent=27 // pred_fallthru
          _
      $region28: #{tpu_custom_call.1} parent=5 // pred_fallthru
        _
      %p1066 = scmp.le.s32.totalorder 2, %s20
      // Predicated region
      $region53: #{tpu_custom_call.1} parent=5 // pred_check
        %p1067 = pneg %p1066
      $region54: #{tpu_custom_call.1} parent=5 // pred_check_branch
        %1069 = sbr.rel (%p1067) target = $region56
      $region55: #{tpu_custom_call.1} parent=5 // pred_region
        %s1070 = ssub.s32 %s20, 2
        // Predicated region
        $region57: #{tpu_custom_call.1} parent=55 // pred_check
          %p1071 = pneg %p110
        $region58: #{tpu_custom_call.1} parent=55 // pred_check_branch
          %1073 = sbr.rel (%p1071) target = $region60
        $region59: #{tpu_custom_call.1} parent=55 // pred_region
          %s1074 = sand.u32 %s95, 1
          %s1075 = scalar_lea.sflag [#allocation5], %s1074
          %s1076 = sand.u32 %s95, 1
          %s1077 = smul.addr %s1076, 128
          %s1078 = scalar_lea.vmem [#allocation8], %s1077
          %1079 = dma.done %s1075, 2048
        $region60: #{tpu_custom_call.1} parent=55 // pred_fallthru
          _
        // Predicated region
        $region61: #{tpu_custom_call.1} parent=55 // pred_check
          %p1080 = pneg %p136
        $region62: #{tpu_custom_call.1} parent=55 // pred_check_branch
          %1082 = sbr.rel (%p1080) target = $region64
        $region63: #{tpu_custom_call.1} parent=55 // pred_region
          %s1083 = sand.u32 %s121, 1
          %s1084 = scalar_lea.sflag [#allocation10], %s1083
          %s1085 = sand.u32 %s121, 1
          %s1086 = smul.addr %s1085, 2
          %s1087 = scalar_lea.vmem [#allocation9], %s1086
          %1088 = dma.done %s1084, 32
        $region64: #{tpu_custom_call.1} parent=55 // pred_fallthru
          _
      $region56: #{tpu_custom_call.1} parent=5 // pred_fallthru
        _
    $region6: #{tpu_custom_call.1} parent=1 // loop_footer
      %s24 = sadd.s32 1, %s20
    $region7: #{tpu_custom_call.1} parent=1 // loop_footer_branch
      %19 = sbr.rel target = $region3
    $region8: #{tpu_custom_call.1} parent=1 // loop_exit
      _
    %1089 = vsyncpa [#allocation4], 1
    %s1090 = scalar_lea.sflag [#allocation4], 1
    %1091 = vsyncpa %s1090, 1
    %1092 = vsyncpa [#allocation7], 1
    %1093 = vsyncpa [#allocation5], 1
    %s1094 = scalar_lea.sflag [#allocation5], 1
    %1095 = vsyncpa %s1094, 1
    %1096 = vsyncpa [#allocation10], 1
    %s1097 = scalar_lea.sflag [#allocation10], 1
    %1098 = vsyncpa %s1097, 1

</llo_original>
